<compile_context>
chip_gen: v7x
topology: tpu7x:2x2x1
jax: 0.10.0
libtpu: 0.0.40
codegen_flags: <defaults>
</compile_context>

<pallas_src>
import jax
import jax.numpy as jnp
from jax.experimental import pallas as pl
from jax.experimental.pallas import tpu as pltpu


def embedding_kernel(x2_ref, mblk_ref, wr1_ref, wr2_ref, o_ref):
    # x2_ref:   (b*n, d)        all batches stacked along rows
    # mblk_ref: (b*n, b*n)      block-diag of (I - wsum), one block per batch
    # wr1_ref:  (d, red)        reduce_embedding weight for the original-x half
    # wr2_ref:  (d, red)        reduce_embedding weight for the diff half
    # o_ref:    (b*n, red)
    x2 = x2_ref[...]
    # Linear_cd (theta != 0 path), all batches in one MXU pass:
    #   x_diff = (I - wsum) @ x    (per batch)  ==  M_blk @ x2
    x_diff = jnp.dot(mblk_ref[...], x2, preferred_element_type=jnp.float32)
    # reduce_embedding on cat((x, x_diff), dim=2), split into two GEMMs.
    out = jnp.dot(x2, wr1_ref[...], preferred_element_type=jnp.float32) \
        + jnp.dot(x_diff, wr2_ref[...], preferred_element_type=jnp.float32)
    o_ref[...] = out.astype(o_ref.dtype)


def embedding_forward(x, conv_w, red_w):
    """x: (b, n, d) float32; conv_w: (max_len, max_len, step); red_w: (red_dim, 2*d)."""
    b, n, d = x.shape
    red_dim = red_w.shape[0]

    # ---- one-time precomputes (plain XLA, outside the kernel) ----
    wsum = conv_w.sum(axis=2)                               # (n, n)  == weight.sum(2)
    m = jnp.eye(n, dtype=x.dtype) - wsum                    # x_diff = m @ x
    # Block-diagonal over batch so a single 2D matmul handles every batch
    # element at once (fine at these sizes; (b*n)^2 floats).
    m_blk = jnp.kron(jnp.eye(b, dtype=x.dtype), m)          # (b*n, b*n)
    wr1 = red_w[:, :d].T                                    # (d, red_dim)
    wr2 = red_w[:, d:].T                                    # (d, red_dim)
    x2 = x.reshape(b * n, d)                                # batch folded into rows

    out2 = pl.pallas_call(
        embedding_kernel,
        out_shape=jax.ShapeDtypeStruct((b * n, red_dim), x.dtype),
        grid_spec=pltpu.PrefetchScalarGridSpec(
            num_scalar_prefetch=0,
            grid=(1,),                                       # single invocation
            in_specs=[
                pl.BlockSpec((b * n, d), lambda i: (0, 0)),          # x slab
                pl.BlockSpec((b * n, b * n), lambda i: (0, 0)),      # block-diag (I - wsum)
                pl.BlockSpec((d, red_dim), lambda i: (0, 0)),        # wr1
                pl.BlockSpec((d, red_dim), lambda i: (0, 0)),        # wr2
            ],
            out_specs=pl.BlockSpec((b * n, red_dim), lambda i: (0, 0)),
        ),
        compiler_params=pltpu.CompilerParams(
            dimension_semantics=("arbitrary",)),             # tiny kernel: keep on one TC
    )(x2, m_blk, wr1, wr2)

    return out2.reshape(b, n, red_dim)


def embedding_reference(x, conv_w, red_w):
    """Pure-JAX reference mirroring the PyTorch forward."""
    b, n, d = x.shape
    wsum = conv_w.sum(axis=2)                                  # (n, n)
    out_diff = jnp.einsum("oi,bid->bod", wsum, x)              # F.conv1d with 1-tap kernel
    x_diff = x - out_diff
    cat = jnp.concatenate([x, x_diff], axis=2)                 # (b, n, 2d)
    return jnp.einsum("bnk,rk->bnr", cat, red_w)               # Linear, no bias


if __name__ == "__main__":
    # Module hyper-params (small, consistent with the forward).
    batch = 2
    max_len = 8          # n  (also conv in/out channels)
    input_dim = 32       # d
    red_dim = 16
    step = 3             # conv kernel_size

    key = jax.random.PRNGKey(0)
    k_x, k_conv, k_red = jax.random.split(key, 3)

    x = jax.random.normal(k_x, (batch, max_len, input_dim), dtype=jnp.float32)
    # nn.Conv1d weight: (out_channels, in_channels, kernel_size)
    conv_w = jax.random.normal(k_conv, (max_len, max_len, step), dtype=jnp.float32) * 0.1
    # nn.Linear(input_dim*2, red_dim, bias=False) weight: (red_dim, 2*input_dim)
    red_w = jax.random.normal(k_red, (red_dim, 2 * input_dim), dtype=jnp.float32) * 0.1

    out = embedding_forward(x, conv_w, red_w)
    out = jax.block_until_ready(out)

    ref = embedding_reference(x, conv_w, red_w)
    assert out.shape == (batch, max_len, red_dim)
    assert jnp.allclose(out, ref, atol=1e-4, rtol=1e-4)

    print("KERNEL_OK")
</pallas_src>

<mosaic_0001>
module attributes {stable_mosaic.version = 11 : i64} {
  func.func @embedding_kernel(%arg0: i32, %arg1: memref<16x32xf32, #tpu.memory_space<vmem>>, %arg2: memref<16x16xf32, #tpu.memory_space<vmem>>, %arg3: memref<32x16xf32, #tpu.memory_space<vmem>>, %arg4: memref<32x16xf32, #tpu.memory_space<vmem>>, %arg5: memref<16x16xf32, #tpu.memory_space<vmem>>) attributes {dimension_semantics = [#tpu.dimension_semantics<arbitrary>], iteration_bounds = array<i64: 1>, scalar_prefetch = 0 : i64, scratch_operands = 0 : i64, tpu.core_type = #tpu.core_type<tc>, window_params = [{pipeline_mode = #tpu.pipeline_mode<synchronous>, transform_indices = @transform_0, window_bounds = array<i64: 16, 32>}, {pipeline_mode = #tpu.pipeline_mode<synchronous>, transform_indices = @transform_1, window_bounds = array<i64: 16, 16>}, {pipeline_mode = #tpu.pipeline_mode<synchronous>, transform_indices = @transform_2, window_bounds = array<i64: 32, 16>}, {pipeline_mode = #tpu.pipeline_mode<synchronous>, transform_indices = @transform_3, window_bounds = array<i64: 32, 16>}, {pipeline_mode = #tpu.pipeline_mode<synchronous>, transform_indices = @transform_4, window_bounds = array<i64: 16, 16>}]} {
    %c0 = arith.constant 0 : index
    %c0_0 = arith.constant 0 : index
    %0 = vector.load %arg1[%c0, %c0_0] : memref<16x32xf32, #tpu.memory_space<vmem>>, vector<16x32xf32>
    %c0_1 = arith.constant 0 : index
    %c0_2 = arith.constant 0 : index
    %1 = vector.load %arg2[%c0_1, %c0_2] : memref<16x16xf32, #tpu.memory_space<vmem>>, vector<16x16xf32>
    %cst = arith.constant dense<0.000000e+00> : vector<16x32xf32>
    %2 = tpu.matmul %1, %0, %cst {dimension_numbers = #tpu.dot_dimension_numbers<[1], [0], [0], [1], [0, 0, 1, 1], [], []>} : vector<16x16xf32>, vector<16x32xf32>, vector<16x32xf32> -> vector<16x32xf32>
    %c0_3 = arith.constant 0 : index
    %c0_4 = arith.constant 0 : index
    %3 = vector.load %arg3[%c0_3, %c0_4] : memref<32x16xf32, #tpu.memory_space<vmem>>, vector<32x16xf32>
    %cst_5 = arith.constant dense<0.000000e+00> : vector<16x16xf32>
    %4 = tpu.matmul %0, %3, %cst_5 {dimension_numbers = #tpu.dot_dimension_numbers<[1], [0], [0], [1], [0, 0, 1, 1], [], []>} : vector<16x32xf32>, vector<32x16xf32>, vector<16x16xf32> -> vector<16x16xf32>
    %c0_6 = arith.constant 0 : index
    %c0_7 = arith.constant 0 : index
    %5 = vector.load %arg4[%c0_6, %c0_7] : memref<32x16xf32, #tpu.memory_space<vmem>>, vector<32x16xf32>
    %cst_8 = arith.constant dense<0.000000e+00> : vector<16x16xf32>
    %6 = tpu.matmul %2, %5, %cst_8 {dimension_numbers = #tpu.dot_dimension_numbers<[1], [0], [0], [1], [0, 0, 1, 1], [], []>} : vector<16x32xf32>, vector<32x16xf32>, vector<16x16xf32> -> vector<16x16xf32>
    %7 = arith.addf %4, %6 : vector<16x16xf32>
    %c0_9 = arith.constant 0 : index
    %c0_10 = arith.constant 0 : index
    %8 = vector.load %arg5[%c0_9, %c0_10] : memref<16x16xf32, #tpu.memory_space<vmem>>, vector<16x16xf32>
    tpu.vector_store %arg5[%c0_9, %c0_10], %7 {strides = array<i32>} : memref<16x16xf32, #tpu.memory_space<vmem>>, vector<16x16xf32>,
    return
  }
  func.func @transform_0(%arg0: i32) -> (i32, i32) {
    %c0_i32 = arith.constant 0 : i32
    %c0_i32_0 = arith.constant 0 : i32
    %c0_i32_1 = arith.constant 0 : i32
    return %c0_i32, %c0_i32_0 : i32, i32
  }
  func.func @transform_1(%arg0: i32) -> (i32, i32) {
    %c0_i32 = arith.constant 0 : i32
    %c0_i32_0 = arith.constant 0 : i32
    %c0_i32_1 = arith.constant 0 : i32
    return %c0_i32, %c0_i32_0 : i32, i32
  }
  func.func @transform_2(%arg0: i32) -> (i32, i32) {
    %c0_i32 = arith.constant 0 : i32
    %c0_i32_0 = arith.constant 0 : i32
    %c0_i32_1 = arith.constant 0 : i32
    return %c0_i32, %c0_i32_0 : i32, i32
  }
  func.func @transform_3(%arg0: i32) -> (i32, i32) {
    %c0_i32 = arith.constant 0 : i32
    %c0_i32_0 = arith.constant 0 : i32
    %c0_i32_1 = arith.constant 0 : i32
    return %c0_i32, %c0_i32_0 : i32, i32
  }
  func.func @transform_4(%arg0: i32) -> (i32, i32) {
    %c0_i32 = arith.constant 0 : i32
    %c0_i32_0 = arith.constant 0 : i32
    %c0_i32_1 = arith.constant 0 : i32
    return %c0_i32, %c0_i32_0 : i32, i32
  }
}

</mosaic_0001>

<llo_original>
// kernel: tpu_custom_call.1
$region0: #{tpu_custom_call.1}
  #allocation0 [shape = 'u32[]', space=smem, size = 0x4, offset = 0x4, fixed_abs, tag = 'smem constant byte address 0x4 - core index']
  #allocation1 [shape = 'u32[144,128]{1,0:T(1,128)}', space=vmem, size = 0x12000, scoped, tag = 'internal scratch']
  %s0 = inlined_call_operand.vmem [shape: f32[16,32], index: 0, kind: input, shape index: {}]
  %s1 = inlined_call_operand.vmem [shape: f32[16,16], index: 1, kind: input, shape index: {}]
  %s2 = inlined_call_operand.vmem [shape: f32[32,16], index: 2, kind: input, shape index: {}]
  %s3 = inlined_call_operand.vmem [shape: f32[32,16], index: 3, kind: input, shape index: {}]
  %s4 = inlined_call_operand.hbm [shape: f32[16,16], index: 4, kind: output, shape index: {}]
  %s5 = sld [smem:[#allocation0]]
  $region26: #{tpu_custom_call.1} parent=0
    _
  %s7 = ssub.s32 1, %s5
  %s8 = scalar_select 0, %s7, %s5
  $region1: #{tpu_custom_call.1} parent=0
    #allocation2 [shape = 'u8[8192]{0}', space=vmem, size = 0x2000, scoped, tag = 'output window, operand 0, single buffered']
    #allocation3 [shape = 's32[1]{0}', space=sflag, size = 0x4, scoped, tag = 'scoped memory for tpu_custom_call.1']
    %9 = vsyncpa [#allocation3], 0
    // Predicated region
    $region2: #{tpu_custom_call.1} parent=1 // pred_check
      _
    $region3: #{tpu_custom_call.1} parent=1 // pred_check_branch
      %11 = sbr.rel (0) target = $region5
    $region4: #{tpu_custom_call.1} parent=1 // pred_region
      _
    $region5: #{tpu_custom_call.1} parent=1 // pred_fallthru
      _
    // Predicated region
    $region6: #{tpu_custom_call.1} parent=1 // pred_check
      _
    $region7: #{tpu_custom_call.1} parent=1 // pred_check_branch
      %13 = sbr.rel (0) target = $region9
    $region8: #{tpu_custom_call.1} parent=1 // pred_region
      _
    $region9: #{tpu_custom_call.1} parent=1 // pred_fallthru
      _
    // Predicated region
    $region10: #{tpu_custom_call.1} parent=1 // pred_check
      _
    $region11: #{tpu_custom_call.1} parent=1 // pred_check_branch
      %15 = sbr.rel (0) target = $region13
    $region12: #{tpu_custom_call.1} parent=1 // pred_region
      _
    $region13: #{tpu_custom_call.1} parent=1 // pred_fallthru
      _
    // Predicated region
    $region14: #{tpu_custom_call.1} parent=1 // pred_check
      _
    $region15: #{tpu_custom_call.1} parent=1 // pred_check_branch
      %17 = sbr.rel (0) target = $region17
    $region16: #{tpu_custom_call.1} parent=1 // pred_region
      _
    $region17: #{tpu_custom_call.1} parent=1 // pred_fallthru
      _
    %v18 = vld [vmem:[%s0] sm:$0xff]
    %v19 = vld [vmem:[%s0 + $0x8] sm:$0xff]
    %v20 = vld [vmem:[%s1] sm:$0xff]
    %v21 = vld [vmem:[%s1 + $0x8] sm:$0xff]
    %vm22 = vcmask 130048
    %v24 = vsel %vm22, %v20, 0
    %v27 = vsel %vm22, %v21, 0
    %29 = vmatprep.subr.mxu0 0.0
    %30 = vmatpush1.msra.mxu0 %v18
    %31 = vmatprep.subr.mxu0 0.0
    %32 = vmatpush1.msra.mxu0 %v19
    %33 = vmatprep.subr.mxu0 0.0
    %34 = vmatpush1.msra.mxu0 0.0
    %35 = vmatprep.subr.mxu0 0.0
    %36 = vmatpush1.msra.mxu0 0.0
    %37 = vmatprep.subr.mxu0 0.0
    %38 = vmatpush1.msra.mxu0 0.0
    %39 = vmatprep.subr.mxu0 0.0
    %40 = vmatpush1.msra.mxu0 0.0
    %41 = vmatprep.subr.mxu0 0.0
    %42 = vmatpush1.msra.mxu0 0.0
    %43 = vmatprep.subr.mxu0 0.0
    %44 = vmatpush1.msra.mxu0 0.0
    %45 = vmatprep.subr.mxu0 0.0
    %46 = vmatpush1.msra.mxu0 0.0
    %47 = vmatprep.subr.mxu0 0.0
    %48 = vmatpush1.msra.mxu0 0.0
    %49 = vmatprep.subr.mxu0 0.0
    %50 = vmatpush1.msra.mxu0 0.0
    %51 = vmatprep.subr.mxu0 0.0
    %52 = vmatpush1.msra.mxu0 0.0
    %53 = vmatprep.subr.mxu0 0.0
    %54 = vmatpush1.msra.mxu0 0.0
    %55 = vmatprep.subr.mxu0 0.0
    %56 = vmatpush1.msra.mxu0 0.0
    %57 = vmatprep.subr.mxu0 0.0
    %58 = vmatpush1.msra.mxu0 0.0
    %59 = vmatprep.subr.mxu0 0.0
    %60 = vmatpush1.msra.mxu0 0.0
    %61 = vmatprep.subr.mxu0 0.0
    %62 = vmatpush1.msra.mxu0 0.0
    %63 = vmatprep.subr.mxu0 0.0
    %64 = vmatpush1.msra.mxu0 0.0
    %65 = vmatprep.subr.mxu0 0.0
    %66 = vmatpush1.msra.mxu0 0.0
    %67 = vmatprep.subr.mxu0 0.0
    %68 = vmatpush1.msra.mxu0 0.0
    %69 = vmatprep.subr.mxu0 0.0
    %70 = vmatpush1.msra.mxu0 0.0
    %71 = vmatprep.subr.mxu0 0.0
    %72 = vmatpush1.msra.mxu0 0.0
    %73 = vmatprep.subr.mxu0 0.0
    %74 = vmatpush1.msra.mxu0 0.0
    %75 = vmatprep.subr.mxu0 0.0
    %76 = vmatpush1.msra.mxu0 0.0
    %77 = vmatprep.subr.mxu0 0.0
    %78 = vmatpush1.msra.mxu0 0.0
    %79 = vmatprep.subr.mxu0 0.0
    %80 = vmatpush1.msra.mxu0 0.0
    %81 = vmatprep.subr.mxu0 0.0
    %82 = vmatpush1.msra.mxu0 0.0
    %83 = vmatprep.subr.mxu0 0.0
    %84 = vmatpush1.msra.mxu0 0.0
    %85 = vmatprep.subr.mxu0 0.0
    %86 = vmatpush1.msra.mxu0 0.0
    %87 = vmatprep.subr.mxu0 0.0
    %88 = vmatpush1.msra.mxu0 0.0
    %89 = vmatprep.subr.mxu0 0.0
    %90 = vmatpush1.msra.mxu0 0.0
    %91 = vmatprep.subr.mxu0 0.0
    %92 = vmatpush1.msra.mxu0 0.0
    %93 = vmatprep.mubr.f32.mxu0 0.0
    %94 = vmatmul.mubr.f32.gmra.mrb[0].mxu0 %v24
    %v95 = vpop.f32.mrb[0].mxu0
    %v96 = vadd.f32 0.0, %v95
    %v97 = vpop.f32.mrb[0].mxu0
    %98 = vmatprep.mubr.f32.mxu0 0.0
    %99 = vmatmul.mubr.f32.gmra.mrb[0].mxu0 %v27
    %v100 = vpop.f32.mrb[0].mxu0
    %v101 = vadd.f32 0.0, %v100
    %v102 = vpop.f32.mrb[0].mxu0
    %103 = vdwg.mxu0
    %v104 = vld [vmem:[%s2] sm:$0xff]
    %v105 = vld [vmem:[%s2 + $0x8] sm:$0xff]
    %v106 = vld [vmem:[%s2 + $0x10] sm:$0xff]
    %v107 = vld [vmem:[%s2 + $0x18] sm:$0xff]
    %v108 = vld [vmem:[%s3] sm:$0xff]
    %v109 = vld [vmem:[%s3 + $0x8] sm:$0xff]
    %v110 = vld [vmem:[%s3 + $0x10] sm:$0xff]
    %v111 = vld [vmem:[%s3 + $0x18] sm:$0xff]
    %vm112 = vcmask 261120
    %v114 = vsel %vm112, %v96, 0
    %v117 = vsel %vm112, %v101, 0
    %119 = vmatprep.subr.mxu0 0.0
    %120 = vmatpush1.msra.mxu0 %v108
    %121 = vmatprep.subr.mxu0 0.0
    %122 = vmatpush1.msra.mxu0 %v109
    %123 = vmatprep.subr.mxu0 0.0
    %124 = vmatpush1.msra.mxu0 %v110
    %125 = vmatprep.subr.mxu0 0.0
    %126 = vmatpush1.msra.mxu0 %v111
    %127 = vmatprep.subr.mxu0 0.0
    %128 = vmatpush1.msra.mxu0 0.0
    %129 = vmatprep.subr.mxu0 0.0
    %130 = vmatpush1.msra.mxu0 0.0
    %131 = vmatprep.subr.mxu0 0.0
    %132 = vmatpush1.msra.mxu0 0.0
    %133 = vmatprep.subr.mxu0 0.0
    %134 = vmatpush1.msra.mxu0 0.0
    %135 = vmatprep.subr.mxu0 0.0
    %136 = vmatpush1.msra.mxu0 0.0
    %137 = vmatprep.subr.mxu0 0.0
    %138 = vmatpush1.msra.mxu0 0.0
    %139 = vmatprep.subr.mxu0 0.0
    %140 = vmatpush1.msra.mxu0 0.0
    %141 = vmatprep.subr.mxu0 0.0
    %142 = vmatpush1.msra.mxu0 0.0
    %143 = vmatprep.subr.mxu0 0.0
    %144 = vmatpush1.msra.mxu0 0.0
    %145 = vmatprep.subr.mxu0 0.0
    %146 = vmatpush1.msra.mxu0 0.0
    %147 = vmatprep.subr.mxu0 0.0
    %148 = vmatpush1.msra.mxu0 0.0
    %149 = vmatprep.subr.mxu0 0.0
    %150 = vmatpush1.msra.mxu0 0.0
    %151 = vmatprep.subr.mxu0 0.0
    %152 = vmatpush1.msra.mxu0 0.0
    %153 = vmatprep.subr.mxu0 0.0
    %154 = vmatpush1.msra.mxu0 0.0
    %155 = vmatprep.subr.mxu0 0.0
    %156 = vmatpush1.msra.mxu0 0.0
    %157 = vmatprep.subr.mxu0 0.0
    %158 = vmatpush1.msra.mxu0 0.0
    %159 = vmatprep.subr.mxu0 0.0
    %160 = vmatpush1.msra.mxu0 0.0
    %161 = vmatprep.subr.mxu0 0.0
    %162 = vmatpush1.msra.mxu0 0.0
    %163 = vmatprep.subr.mxu0 0.0
    %164 = vmatpush1.msra.mxu0 0.0
    %165 = vmatprep.subr.mxu0 0.0
    %166 = vmatpush1.msra.mxu0 0.0
    %167 = vmatprep.subr.mxu0 0.0
    %168 = vmatpush1.msra.mxu0 0.0
    %169 = vmatprep.subr.mxu0 0.0
    %170 = vmatpush1.msra.mxu0 0.0
    %171 = vmatprep.subr.mxu0 0.0
    %172 = vmatpush1.msra.mxu0 0.0
    %173 = vmatprep.subr.mxu0 0.0
    %174 = vmatpush1.msra.mxu0 0.0
    %175 = vmatprep.subr.mxu0 0.0
    %176 = vmatpush1.msra.mxu0 0.0
    %177 = vmatprep.subr.mxu0 0.0
    %178 = vmatpush1.msra.mxu0 0.0
    %179 = vmatprep.subr.mxu0 0.0
    %180 = vmatpush1.msra.mxu0 0.0
    %181 = vmatprep.subr.mxu0 0.0
    %182 = vmatpush1.msra.mxu0 0.0
    %183 = vmatprep.mubr.f32.mxu0 0.0
    %184 = vmatmul.mubr.f32.gmra.mrb[0].mxu0 %v114
    %v185 = vpop.f32.mrb[0].mxu0
    %v186 = vadd.f32 0.0, %v185
    %v187 = vpop.f32.mrb[0].mxu0
    %188 = vmatprep.mubr.f32.mxu0 0.0
    %189 = vmatmul.mubr.f32.gmra.mrb[0].mxu0 %v117
    %v190 = vpop.f32.mrb[0].mxu0
    %v191 = vadd.f32 0.0, %v190
    %v192 = vpop.f32.mrb[0].mxu0
    %193 = vdwg.mxu0
    %v195 = vsel %vm112, %v18, 0
    %v198 = vsel %vm112, %v19, 0
    %200 = vmatprep.subr.mxu0 0.0
    %201 = vmatpush1.msra.mxu0 %v104
    %202 = vmatprep.subr.mxu0 0.0
    %203 = vmatpush1.msra.mxu0 %v105
    %204 = vmatprep.subr.mxu0 0.0
    %205 = vmatpush1.msra.mxu0 %v106
    %206 = vmatprep.subr.mxu0 0.0
    %207 = vmatpush1.msra.mxu0 %v107
    %208 = vmatprep.subr.mxu0 0.0
    %209 = vmatpush1.msra.mxu0 0.0
    %210 = vmatprep.subr.mxu0 0.0
    %211 = vmatpush1.msra.mxu0 0.0
    %212 = vmatprep.subr.mxu0 0.0
    %213 = vmatpush1.msra.mxu0 0.0
    %214 = vmatprep.subr.mxu0 0.0
    %215 = vmatpush1.msra.mxu0 0.0
    %216 = vmatprep.subr.mxu0 0.0
    %217 = vmatpush1.msra.mxu0 0.0
    %218 = vmatprep.subr.mxu0 0.0
    %219 = vmatpush1.msra.mxu0 0.0
    %220 = vmatprep.subr.mxu0 0.0
    %221 = vmatpush1.msra.mxu0 0.0
    %222 = vmatprep.subr.mxu0 0.0
    %223 = vmatpush1.msra.mxu0 0.0
    %224 = vmatprep.subr.mxu0 0.0
    %225 = vmatpush1.msra.mxu0 0.0
    %226 = vmatprep.subr.mxu0 0.0
    %227 = vmatpush1.msra.mxu0 0.0
    %228 = vmatprep.subr.mxu0 0.0
    %229 = vmatpush1.msra.mxu0 0.0
    %230 = vmatprep.subr.mxu0 0.0
    %231 = vmatpush1.msra.mxu0 0.0
    %232 = vmatprep.subr.mxu0 0.0
    %233 = vmatpush1.msra.mxu0 0.0
    %234 = vmatprep.subr.mxu0 0.0
    %235 = vmatpush1.msra.mxu0 0.0
    %236 = vmatprep.subr.mxu0 0.0
    %237 = vmatpush1.msra.mxu0 0.0
    %238 = vmatprep.subr.mxu0 0.0
    %239 = vmatpush1.msra.mxu0 0.0
    %240 = vmatprep.subr.mxu0 0.0
    %241 = vmatpush1.msra.mxu0 0.0
    %242 = vmatprep.subr.mxu0 0.0
    %243 = vmatpush1.msra.mxu0 0.0
    %244 = vmatprep.subr.mxu0 0.0
    %245 = vmatpush1.msra.mxu0 0.0
    %246 = vmatprep.subr.mxu0 0.0
    %247 = vmatpush1.msra.mxu0 0.0
    %248 = vmatprep.subr.mxu0 0.0
    %249 = vmatpush1.msra.mxu0 0.0
    %250 = vmatprep.subr.mxu0 0.0
    %251 = vmatpush1.msra.mxu0 0.0
    %252 = vmatprep.subr.mxu0 0.0
    %253 = vmatpush1.msra.mxu0 0.0
    %254 = vmatprep.subr.mxu0 0.0
    %255 = vmatpush1.msra.mxu0 0.0
    %256 = vmatprep.subr.mxu0 0.0
    %257 = vmatpush1.msra.mxu0 0.0
    %258 = vmatprep.subr.mxu0 0.0
    %259 = vmatpush1.msra.mxu0 0.0
    %260 = vmatprep.subr.mxu0 0.0
    %261 = vmatpush1.msra.mxu0 0.0
    %262 = vmatprep.subr.mxu0 0.0
    %263 = vmatpush1.msra.mxu0 0.0
    %264 = vmatprep.mubr.f32.mxu0 0.0
    %265 = vmatmul.mubr.f32.gmra.mrb[0].mxu0 %v195
    %v266 = vpop.f32.mrb[0].mxu0
    %v267 = vadd.f32 %v186, %v266
    %v268 = vpop.f32.mrb[0].mxu0
    %269 = vmatprep.mubr.f32.mxu0 0.0
    %270 = vmatmul.mubr.f32.gmra.mrb[0].mxu0 %v198
    %v271 = vpop.f32.mrb[0].mxu0
    %v272 = vadd.f32 %v191, %v271
    %v273 = vpop.f32.mrb[0].mxu0
    %274 = vdwg.mxu0
    %275 = vst.msk [vmem:[#allocation2] sm:$0xff] %vm22, %v267
    %276 = vst.msk [vmem:[#allocation2 + $0x8] sm:$0xff] %vm22, %v272
    // Predicated region
    $region18: #{tpu_custom_call.1} parent=1 // pred_check
      _
    $region19: #{tpu_custom_call.1} parent=1 // pred_check_branch
      %278 = sbr.rel (0) target = $region21
    $region20: #{tpu_custom_call.1} parent=1 // pred_region
      %s280 = ssub.s32 256, 256
      %281 = vsyncadd [#allocation3], %s280
      %s282 = sshll.u32 [#allocation2], 4
      %s283 = int_to_ptr.vmem [resolvable:$true] %s282
      %288 = dma.vmem_to_hbm [thread:$0]  %s283, 256, %s4, [#allocation3], 128, 128, 8
    $region21: #{tpu_custom_call.1} parent=1 // pred_fallthru
      _
    // Predicated region
    $region22: #{tpu_custom_call.1} parent=1 // pred_check
      _
    $region23: #{tpu_custom_call.1} parent=1 // pred_check_branch
      %290 = sbr.rel (0) target = $region25
    $region24: #{tpu_custom_call.1} parent=1 // pred_region
      %291 = dma.done [#allocation3], 256
    $region25: #{tpu_custom_call.1} parent=1 // pred_fallthru
      _
    %292 = vsyncpa [#allocation3], 1

</llo_original>
